<compile_context>
chip_gen: v5e
topology: v5e:2x2
jax: 0.10.0
libtpu: 0.0.40
codegen_flags: <defaults>
</compile_context>

<pallas_src>
import jax
import jax.numpy as jnp
from jax.experimental import pallas as pl
from jax.experimental.pallas import tpu as pltpu


def _cdiv(a, b):
    return -(-a // b)


def _round_up(x, m):
    return _cdiv(x, m) * m


# ----------------------------------------------------------------------------
# Kernels
# ----------------------------------------------------------------------------
def _ffn_kernel_resident(x_ref, w1_ref, b1_ref, w2_ref, b2_ref, o_ref):
    # Whole padded weights are VMEM-resident; one fused pass per row tile.
    h = jnp.dot(x_ref[...], w1_ref[...], preferred_element_type=jnp.float32)
    h = jnp.maximum(h + b1_ref[...], 0.0)
    y = jnp.dot(h.astype(w2_ref.dtype), w2_ref[...],
                preferred_element_type=jnp.float32)
    o_ref[...] = (y + b2_ref[...]).astype(o_ref.dtype)


def _ffn_kernel_streamed_f32out(x_ref, w1_ref, b1_ref, w2_ref, b2_ref, o_ref):
    # f32 output block doubles as the accumulator across the ff-chunk axis.
    k = pl.program_id(1)

    @pl.when(k == 0)
    def _init():
        o_ref[...] = jnp.broadcast_to(b2_ref[...], o_ref.shape)

    h = jnp.dot(x_ref[...], w1_ref[...], preferred_element_type=jnp.float32)
    h = jnp.maximum(h + b1_ref[...], 0.0)
    o_ref[...] += jnp.dot(h.astype(w2_ref.dtype), w2_ref[...],
                          preferred_element_type=jnp.float32)


def _ffn_kernel_streamed_acc(x_ref, w1_ref, b1_ref, w2_ref, b2_ref, o_ref,
                             acc_ref):
    # Non-f32 output: accumulate in an f32 VMEM scratch, cast at the end.
    k = pl.program_id(1)

    @pl.when(k == 0)
    def _init():
        acc_ref[...] = jnp.broadcast_to(b2_ref[...], acc_ref.shape)

    h = jnp.dot(x_ref[...], w1_ref[...], preferred_element_type=jnp.float32)
    h = jnp.maximum(h + b1_ref[...], 0.0)
    acc_ref[...] += jnp.dot(h.astype(w2_ref.dtype), w2_ref[...],
                            preferred_element_type=jnp.float32)

    @pl.when(k == pl.num_programs(1) - 1)
    def _finalize():
        o_ref[...] = acc_ref[...].astype(o_ref.dtype)


# ----------------------------------------------------------------------------
# Tile / path selection
# ----------------------------------------------------------------------------
def _vmem_capacity_bytes():
    try:
        info = pltpu.get_tpu_info()
        cap = int(getattr(info, "vmem_capacity_bytes", 0))
        if cap > 0:
            return cap
    except Exception:
        pass
    return 64 << 20  # conservative default (v7x per-TensorCore VMEM)


def _select_tiles(M, d_pad, ff128, cbytes, obytes, need_acc, budget,
                  tm_req, tff_req, force_streamed):
    """Pick (resident, tm, tff) fitting the VMEM budget."""
    sub = max(8, 32 // cbytes)                 # sublane tile: 8 f32, 16 bf16
    m_aligned = _round_up(max(M, 1), sub)

    # Prefer >= 2 row tiles when there is enough work so the "parallel" row
    # axis can be sharded across both v7x TensorCores.
    tm_cap = _round_up(_cdiv(m_aligned, 2), sub) if m_aligned >= 512 else m_aligned

    if tm_req is not None:
        tm_cands = [max(sub, min(_round_up(tm_req, sub), tm_cap))]
    else:
        tm_cands = [t for t in (2048, 1536, 1024, 768, 512, 384, 256, 192,
                                128, 96, 64, 48, 32, 16, 8)
                    if t % sub == 0 and t <= tm_cap]
        if not tm_cands or tm_cands[0] < tm_cap:
            tm_cands = [tm_cap] + tm_cands

    if tff_req is not None:
        tff_cands = [max(128, min(_round_up(tff_req, 128), ff128))]
    else:
        tff_cands = [t for t in (4096, 3072, 2048, 1536, 1024, 768, 512, 384,
                                 256, 128) if t <= ff128]
        if not tff_cands:
            tff_cands = [ff128]

    def resident_bytes(tm):
        return (2 * tm * d_pad * cbytes            # x tile (double-buffered)
                + 2 * tm * d_pad * obytes          # out tile
                + 2 * d_pad * ff128 * cbytes       # w1 (counted 2x, conservative)
                + 2 * ff128 * d_pad * cbytes       # w2
                + 2 * (ff128 + d_pad) * 4          # biases (f32)
                + tm * ff128 * (4 + cbytes))       # h (f32) + cast copy

    def streamed_bytes(tm, tff):
        return (2 * tm * d_pad * cbytes
                + 2 * tm * d_pad * obytes
                + 2 * d_pad * tff * cbytes
                + 2 * tff * d_pad * cbytes
                + 2 * (tff + d_pad) * 4
                + (tm * d_pad * 4 if need_acc else 0)
                + tm * tff * (4 + cbytes))

    # Weights-resident fast path: kills per-row-tile weight re-streaming.
    if not force_streamed and tff_req is None:
        weight_vmem = 4 * d_pad * ff128 * cbytes   # w1 + w2, double-buffered
        if weight_vmem <= int(0.6 * budget):
            for tm in tm_cands:
                if resident_bytes(tm) <= budget:
                    return True, tm, ff128

    # Streamed path: largest row tile first (arithmetic intensity vs weight
    # traffic), then the largest ff chunk that fits (amortizes grid-step cost).
    min_good_tff = min(512, ff128)
    fallback = None
    for tm in tm_cands:
        for tff in tff_cands:
            if streamed_bytes(tm, tff) <= budget:
                if tff >= min_good_tff:
                    return False, tm, tff
                if fallback is None:
                    fallback = (tm, tff)
                break
    if fallback is not None:
        return False, fallback[0], fallback[1]
    return False, tm_cands[-1], tff_cands[-1]


def _pad_to(a, shape, dtype):
    """Zero-pad to `shape` and cast; skipped entirely when already aligned."""
    if a.shape != shape:
        a = jnp.pad(a, [(0, t - s) for s, t in zip(a.shape, shape)])
    if a.dtype != dtype:
        a = a.astype(dtype)
    return a


# ----------------------------------------------------------------------------
# Public wrapper
# ----------------------------------------------------------------------------
def ffn_pallas(x, w1, b1, w2, b2, *, tm=None, tff=None, compute_dtype=None,
               force_streamed=False):
    """y = relu(x @ w1 + b1) @ w2 + b2   (torch FFN forward, weights pre-transposed).

    x: [..., d_model]; w1: [d_model, dim_ff]; b1: [dim_ff];
    w2: [dim_ff, d_model]; b2: [d_model].  Returns x.shape / x.dtype.
    Note: in the bf16 path, h is down-cast to bf16 before the second matmul
    (f32 accumulation is kept), so results differ slightly from a full-f32 run.
    """
    orig_shape = x.shape
    out_dtype = x.dtype
    d_model = orig_shape[-1]
    dim_ff = w1.shape[1]

    if compute_dtype is None:
        # bf16 matmuls (with f32 accumulation) hit MXU peak; f32 matmuls do not.
        compute_dtype = jnp.bfloat16 if x.dtype == jnp.float32 else x.dtype
    compute_dtype = jnp.dtype(compute_dtype)
    cbytes = compute_dtype.itemsize
    obytes = jnp.dtype(out_dtype).itemsize

    x2d = x.reshape(-1, d_model)
    M = x2d.shape[0]

    d_pad = _round_up(d_model, 128)            # lane-dense feature dim
    ff128 = _round_up(dim_ff, 128)

    cap = _vmem_capacity_bytes()
    budget = int(cap * 0.78)                   # tile-selection budget
    vmem_limit = int(cap * 0.88)               # scoped-VMEM limit (headroom)

    need_acc = (jnp.dtype(out_dtype) != jnp.dtype(jnp.float32))
    resident, tm_eff, tff_eff = _select_tiles(
        M, d_pad, ff128, cbytes, obytes, need_acc, budget, tm, tff,
        force_streamed)

    sub = max(8, 32 // cbytes)
    # Rebalance row tiles so a ragged M does not waste up to tm-1 padded rows.
    m_aligned = _round_up(max(M, 1), sub)
    n_rows = _cdiv(m_aligned, tm_eff)
    tm_eff = _round_up(_cdiv(m_aligned, n_rows), sub)
    m_pad = tm_eff * n_rows

    if resident:
        ff_pad = ff128
        n_ff = 1
    else:
        n_ff = _cdiv(ff128, tff_eff)
        tff_eff = _round_up(_cdiv(ff128, n_ff), 128)
        ff_pad = tff_eff * n_ff

    # ---- pad operands (no-op when already aligned); zero padding is exact ---
    xp = _pad_to(x2d, (m_pad, d_pad), compute_dtype)
    w1p = _pad_to(w1, (d_pad, ff_pad), compute_dtype)
    b1p = _pad_to(b1.reshape(1, -1), (1, ff_pad), jnp.float32)
    w2p = _pad_to(w2, (ff_pad, d_pad), compute_dtype)
    b2p = _pad_to(b2.reshape(1, -1), (1, d_pad), jnp.float32)

    # ---- advisory cost hint (weights counted once per row tile if streamed) -
    weight_bytes = (w1p.size + w2p.size) * cbytes + (b1p.size + b2p.size) * 4
    weight_passes = 1 if resident else n_rows
    cost = pl.CostEstimate(
        flops=4 * m_pad * d_pad * ff_pad,
        transcendentals=0,
        bytes_accessed=(xp.size * cbytes + m_pad * d_pad * obytes
                        + weight_passes * weight_bytes))

    if resident:
        grid = (n_rows,)
        in_specs = [
            pl.BlockSpec((tm_eff, d_pad), lambda i: (i, 0)),       # x row tile
            pl.BlockSpec((d_pad, ff_pad), lambda i: (0, 0)),       # w1 (resident)
            pl.BlockSpec((1, ff_pad), lambda i: (0, 0)),           # b1
            pl.BlockSpec((ff_pad, d_pad), lambda i: (0, 0)),       # w2 (resident)
            pl.BlockSpec((1, d_pad), lambda i: (0, 0)),            # b2
        ]
        out_specs = pl.BlockSpec((tm_eff, d_pad), lambda i: (i, 0))
        scratch_shapes = []
        kernel = _ffn_kernel_resident
        dim_sem = ("parallel",)
    else:
        grid = (n_rows, n_ff)
        in_specs = [
            pl.BlockSpec((tm_eff, d_pad), lambda i, k: (i, 0)),    # x row tile
            pl.BlockSpec((d_pad, tff_eff), lambda i, k: (0, k)),   # w1 chunk
            pl.BlockSpec((1, tff_eff), lambda i, k: (0, k)),       # b1 chunk
            pl.BlockSpec((tff_eff, d_pad), lambda i, k: (k, 0)),   # w2 chunk
            pl.BlockSpec((1, d_pad), lambda i, k: (0, 0)),         # b2
        ]
        out_specs = pl.BlockSpec((tm_eff, d_pad), lambda i, k: (i, 0))
        if need_acc:
            scratch_shapes = [pltpu.VMEM((tm_eff, d_pad), jnp.float32)]
            kernel = _ffn_kernel_streamed_acc
        else:
            scratch_shapes = []
            kernel = _ffn_kernel_streamed_f32out
        dim_sem = ("parallel", "arbitrary")
        # TODO(synk): if profiling shows an exposed DMA bubble at row-tile
        # boundaries, add pipeline_mode=pl.Buffered(3) to the w1/w2 specs.

    out = pl.pallas_call(
        kernel,
        out_shape=jax.ShapeDtypeStruct((m_pad, d_pad), out_dtype),
        grid_spec=pltpu.PrefetchScalarGridSpec(
            num_scalar_prefetch=0,
            grid=grid,
            in_specs=in_specs,
            out_specs=out_specs,
            scratch_shapes=scratch_shapes,
        ),
        compiler_params=pltpu.CompilerParams(
            dimension_semantics=dim_sem,
            vmem_limit_bytes=vmem_limit,
        ),
        cost_estimate=cost,
    )(xp, w1p, b1p, w2p, b2p)

    return out[:M, :d_model].reshape(orig_shape)


# ----------------------------------------------------------------------------
# Test harness
# ----------------------------------------------------------------------------
def init_params(key, d_model, dim_ff, dtype=jnp.float32):
    """torch.nn.Linear-style U(-1/sqrt(fan_in), ...) init, pre-transposed."""
    k1, k2, k3, k4 = jax.random.split(key, 4)
    bound1 = 1.0 / (d_model ** 0.5)
    bound2 = 1.0 / (dim_ff ** 0.5)
    w1 = jax.random.uniform(k1, (d_model, dim_ff), dtype, -bound1, bound1)
    b1 = jax.random.uniform(k2, (dim_ff,), dtype, -bound1, bound1)
    w2 = jax.random.uniform(k3, (dim_ff, d_model), dtype, -bound2, bound2)
    b2 = jax.random.uniform(k4, (d_model,), dtype, -bound2, bound2)
    return w1, b1, w2, b2


def ffn_ref(x, w1, b1, w2, b2):
    return jnp.maximum(x @ w1 + b1, 0.0) @ w2 + b2


if __name__ == "__main__":
    key = jax.random.PRNGKey(0)
    kx, kp, kx2, kp2 = jax.random.split(key, 4)

    # --- small FFN: weights-resident path ------------------------------------
    batch, seq, d_model, dim_ff = 2, 8, 32, 64
    x = jax.random.normal(kx, (batch, seq, d_model), dtype=jnp.float32)
    w1, b1, w2, b2 = init_params(kp, d_model, dim_ff, jnp.float32)
    ref = ffn_ref(x, w1, b1, w2, b2)

    # exact f32-matmul path, tight tolerance
    out = jax.block_until_ready(
        ffn_pallas(x, w1, b1, w2, b2, compute_dtype=jnp.float32))
    assert out.shape == x.shape and out.dtype == x.dtype
    assert jnp.allclose(out, ref, atol=1e-5, rtol=1e-5), float(
        jnp.max(jnp.abs(out - ref)))

    # default path (bf16 MXU matmuls, f32 accumulation), loose tolerance
    out_bf = jax.block_until_ready(ffn_pallas(x, w1, b1, w2, b2))
    assert jnp.allclose(out_bf, ref, atol=5e-2, rtol=5e-2)

    # --- larger FFN forced onto the streamed (ff-chunked) path ----------------
    d_model2, dim_ff2 = 128, 512
    x2 = jax.random.normal(kx2, (batch, seq, d_model2), dtype=jnp.float32)
    w1b, b1b, w2b, b2b = init_params(kp2, d_model2, dim_ff2, jnp.float32)
    ref2 = ffn_ref(x2, w1b, b1b, w2b, b2b)

    # f32 output -> accumulate directly into the output block (no scratch)
    out2 = jax.block_until_ready(
        ffn_pallas(x2, w1b, b1b, w2b, b2b, tff=128,
                   compute_dtype=jnp.float32, force_streamed=True))
    assert jnp.allclose(out2, ref2, atol=1e-4, rtol=1e-4), float(
        jnp.max(jnp.abs(out2 - ref2)))

    # bf16 output -> f32 VMEM accumulator scratch path
    out3 = jax.block_until_ready(
        ffn_pallas(x2.astype(jnp.bfloat16), w1b.astype(jnp.bfloat16),
                   b1b.astype(jnp.bfloat16), w2b.astype(jnp.bfloat16),
                   b2b.astype(jnp.bfloat16), tff=128, force_streamed=True))
    assert out3.dtype == jnp.bfloat16
    assert jnp.allclose(out3.astype(jnp.float32), ref2, atol=1e-1, rtol=1e-1)

    print("KERNEL_OK")
</pallas_src>

<mosaic_0001>
module attributes {stable_mosaic.version = 11 : i64} {
  func.func @_ffn_kernel_resident(%arg0: i32, %arg1: memref<16x128xf32, #tpu.memory_space<vmem>>, %arg2: memref<128x128xf32, #tpu.memory_space<vmem>>, %arg3: memref<1x128xf32, #tpu.memory_space<vmem>>, %arg4: memref<128x128xf32, #tpu.memory_space<vmem>>, %arg5: memref<1x128xf32, #tpu.memory_space<vmem>>, %arg6: memref<16x128xf32, #tpu.memory_space<vmem>>) attributes {dimension_semantics = [#tpu.dimension_semantics<parallel>], iteration_bounds = array<i64: 1>, scalar_prefetch = 0 : i64, scratch_operands = 0 : i64, tpu.core_type = #tpu.core_type<tc>, window_params = [{transform_indices = @transform_0, window_bounds = array<i64: 16, 128>}, {pipeline_mode = #tpu.pipeline_mode<synchronous>, transform_indices = @transform_1, window_bounds = array<i64: 128, 128>}, {pipeline_mode = #tpu.pipeline_mode<synchronous>, transform_indices = @transform_2, window_bounds = array<i64: 1, 128>}, {pipeline_mode = #tpu.pipeline_mode<synchronous>, transform_indices = @transform_3, window_bounds = array<i64: 128, 128>}, {pipeline_mode = #tpu.pipeline_mode<synchronous>, transform_indices = @transform_4, window_bounds = array<i64: 1, 128>}, {transform_indices = @transform_5, window_bounds = array<i64: 16, 128>}]} {
    %c0 = arith.constant 0 : index
    %c0_0 = arith.constant 0 : index
    %0 = vector.load %arg1[%c0, %c0_0] : memref<16x128xf32, #tpu.memory_space<vmem>>, vector<16x128xf32>
    %c0_1 = arith.constant 0 : index
    %c0_2 = arith.constant 0 : index
    %1 = vector.load %arg2[%c0_1, %c0_2] : memref<128x128xf32, #tpu.memory_space<vmem>>, vector<128x128xf32>
    %cst = arith.constant dense<0.000000e+00> : vector<16x128xf32>
    %2 = tpu.matmul %0, %1, %cst {dimension_numbers = #tpu.dot_dimension_numbers<[1], [0], [0], [1], [0, 0, 1, 1], [], []>} : vector<16x128xf32>, vector<128x128xf32>, vector<16x128xf32> -> vector<16x128xf32>
    %c0_3 = arith.constant 0 : index
    %c0_4 = arith.constant 0 : index
    %3 = vector.load %arg3[%c0_3, %c0_4] : memref<1x128xf32, #tpu.memory_space<vmem>>, vector<1x128xf32>
    %4 = vector.broadcast %3 : vector<1x128xf32> to vector<16x128xf32>
    %5 = arith.addf %2, %4 : vector<16x128xf32>
    %cst_5 = arith.constant 0.000000e+00 : f32
    %6 = vector.broadcast %cst_5 : f32 to vector<16x128xf32>
    %7 = arith.maximumf %5, %6 : vector<16x128xf32>
    %c0_6 = arith.constant 0 : index
    %c0_7 = arith.constant 0 : index
    %8 = vector.load %arg4[%c0_6, %c0_7] : memref<128x128xf32, #tpu.memory_space<vmem>>, vector<128x128xf32>
    %cst_8 = arith.constant dense<0.000000e+00> : vector<16x128xf32>
    %9 = tpu.matmul %7, %8, %cst_8 {dimension_numbers = #tpu.dot_dimension_numbers<[1], [0], [0], [1], [0, 0, 1, 1], [], []>} : vector<16x128xf32>, vector<128x128xf32>, vector<16x128xf32> -> vector<16x128xf32>
    %c0_9 = arith.constant 0 : index
    %c0_10 = arith.constant 0 : index
    %10 = vector.load %arg5[%c0_9, %c0_10] : memref<1x128xf32, #tpu.memory_space<vmem>>, vector<1x128xf32>
    %11 = vector.broadcast %10 : vector<1x128xf32> to vector<16x128xf32>
    %12 = arith.addf %9, %11 : vector<16x128xf32>
    %c0_11 = arith.constant 0 : index
    %c0_12 = arith.constant 0 : index
    %13 = vector.load %arg6[%c0_11, %c0_12] : memref<16x128xf32, #tpu.memory_space<vmem>>, vector<16x128xf32>
    tpu.vector_store %arg6[%c0_11, %c0_12], %12 {strides = array<i32>} : memref<16x128xf32, #tpu.memory_space<vmem>>, vector<16x128xf32>,
    return
  }
  func.func @transform_0(%arg0: i32) -> (i32, i32) {
    %c0_i32 = arith.constant 0 : i32
    %c0_i32_0 = arith.constant 0 : i32
    return %arg0, %c0_i32 : i32, i32
  }
  func.func @transform_1(%arg0: i32) -> (i32, i32) {
    %c0_i32 = arith.constant 0 : i32
    %c0_i32_0 = arith.constant 0 : i32
    %c0_i32_1 = arith.constant 0 : i32
    return %c0_i32, %c0_i32_0 : i32, i32
  }
  func.func @transform_2(%arg0: i32) -> (i32, i32) {
    %c0_i32 = arith.constant 0 : i32
    %c0_i32_0 = arith.constant 0 : i32
    %c0_i32_1 = arith.constant 0 : i32
    return %c0_i32, %c0_i32_0 : i32, i32
  }
  func.func @transform_3(%arg0: i32) -> (i32, i32) {
    %c0_i32 = arith.constant 0 : i32
    %c0_i32_0 = arith.constant 0 : i32
    %c0_i32_1 = arith.constant 0 : i32
    return %c0_i32, %c0_i32_0 : i32, i32
  }
  func.func @transform_4(%arg0: i32) -> (i32, i32) {
    %c0_i32 = arith.constant 0 : i32
    %c0_i32_0 = arith.constant 0 : i32
    %c0_i32_1 = arith.constant 0 : i32
    return %c0_i32, %c0_i32_0 : i32, i32
  }
  func.func @transform_5(%arg0: i32) -> (i32, i32) {
    %c0_i32 = arith.constant 0 : i32
    %c0_i32_0 = arith.constant 0 : i32
    return %arg0, %c0_i32 : i32, i32
  }
}

</mosaic_0001>

<llo_original>
// kernel: tpu_custom_call.1
$region0: #{tpu_custom_call.1}
  #allocation0 [shape = 'u32[]', space=smem, size = 0x4, offset = 0x4, fixed_abs, tag = 'smem constant byte address 0x4 - core index']
  #allocation1 [shape = 'u32[72,128]{1,0:T(1,128)}', space=vmem, size = 0x9000, scoped, tag = 'internal scratch']
  %s0 = inlined_call_operand.hbm [shape: f32[16,128], index: 0, kind: input, shape index: {}]
  %s1 = inlined_call_operand.hbm [shape: f32[128,128], index: 1, kind: input, shape index: {}]
  %s2 = inlined_call_operand.vmem [shape: f32[1,128], index: 2, kind: input, shape index: {}]
  %s3 = inlined_call_operand.hbm [shape: f32[128,128], index: 3, kind: input, shape index: {}]
  %s4 = inlined_call_operand.vmem [shape: f32[1,128], index: 4, kind: input, shape index: {}]
  %s5 = inlined_call_operand.hbm [shape: f32[16,128], index: 5, kind: output, shape index: {}]
  %s6 = sld [smem:[#allocation0]]
  $region42: #{tpu_custom_call.1} parent=0
    _
  %s8 = ssub.s32 1, %s6
  %s9 = scalar_select 0, %s8, %s6
  $region1: #{tpu_custom_call.1} parent=0
    #allocation2 [shape = 'u8[8192]{0}', space=vmem, size = 0x2000, scoped, tag = 'input window, operand 0, single buffered']
    #allocation3 [shape = 's32[1]{0}', space=sflag, size = 0x4, scoped, tag = 'scoped memory for tpu_custom_call.1']
    #allocation4 [shape = 's32[1]{0}', space=sflag, size = 0x4, scoped, tag = 'scoped memory for tpu_custom_call.1']
    #allocation5 [shape = 'u8[65536]{0}', space=vmem, size = 0x10000, scoped, tag = 'input window, operand 1, single buffered']
    #allocation6 [shape = 's32[1]{0}', space=sflag, size = 0x4, scoped, tag = 'scoped memory for tpu_custom_call.1']
    #allocation7 [shape = 'u8[65536]{0}', space=vmem, size = 0x10000, scoped, tag = 'input window, operand 3, single buffered']
    #allocation8 [shape = 'u8[8192]{0}', space=vmem, size = 0x2000, scoped, tag = 'output window, operand 0, single buffered']
    %10 = vsyncpa [#allocation3], 0
    %11 = vsyncpa [#allocation6], 0
    %12 = vsyncpa [#allocation4], 0
    // Predicated region
    $region2: #{tpu_custom_call.1} parent=1 // pred_check
      _
    $region3: #{tpu_custom_call.1} parent=1 // pred_check_branch
      %14 = sbr.rel (0) target = $region5
    $region4: #{tpu_custom_call.1} parent=1 // pred_region
      %16 = vsyncadd [#allocation3], 0
      %s17 = sshll.u32 %s0, 4
      %s18 = int_to_ptr.hbm [resolvable:$true] %s17
      %s19 = sshll.u32 [#allocation2], 4
      %s20 = int_to_ptr.vmem [resolvable:$true] %s19
      %25 = dma.hbm_to_vmem [thread:$0]  %s18, 256, %s20, [#allocation3], 128, 128, 8
    $region5: #{tpu_custom_call.1} parent=1 // pred_fallthru
      _
    // Predicated region
    $region6: #{tpu_custom_call.1} parent=1 // pred_check
      _
    $region7: #{tpu_custom_call.1} parent=1 // pred_check_branch
      %27 = sbr.rel (0) target = $region9
    $region8: #{tpu_custom_call.1} parent=1 // pred_region
      %29 = vsyncadd [#allocation6], 0
      %s30 = sshll.u32 %s1, 4
      %s31 = int_to_ptr.hbm [resolvable:$true] %s30
      %s32 = sshll.u32 [#allocation5], 4
      %s33 = int_to_ptr.vmem [resolvable:$true] %s32
      %38 = dma.hbm_to_vmem [thread:$0]  %s31, 2048, %s33, [#allocation6], 128, 128, 8
    $region9: #{tpu_custom_call.1} parent=1 // pred_fallthru
      _
    // Predicated region
    $region10: #{tpu_custom_call.1} parent=1 // pred_check
      _
    $region11: #{tpu_custom_call.1} parent=1 // pred_check_branch
      %40 = sbr.rel (0) target = $region13
    $region12: #{tpu_custom_call.1} parent=1 // pred_region
      _
    $region13: #{tpu_custom_call.1} parent=1 // pred_fallthru
      _
    // Predicated region
    $region14: #{tpu_custom_call.1} parent=1 // pred_check
      _
    $region15: #{tpu_custom_call.1} parent=1 // pred_check_branch
      %42 = sbr.rel (0) target = $region17
    $region16: #{tpu_custom_call.1} parent=1 // pred_region
      %44 = vsyncadd [#allocation6], 0
      %s45 = sshll.u32 %s3, 4
      %s46 = int_to_ptr.hbm [resolvable:$true] %s45
      %s47 = sshll.u32 [#allocation7], 4
      %s48 = int_to_ptr.vmem [resolvable:$true] %s47
      %53 = dma.hbm_to_vmem [thread:$0]  %s46, 2048, %s48, [#allocation6], 128, 128, 8
    $region17: #{tpu_custom_call.1} parent=1 // pred_fallthru
      _
    // Predicated region
    $region18: #{tpu_custom_call.1} parent=1 // pred_check
      _
    $region19: #{tpu_custom_call.1} parent=1 // pred_check_branch
      %55 = sbr.rel (0) target = $region21
    $region20: #{tpu_custom_call.1} parent=1 // pred_region
      _
    $region21: #{tpu_custom_call.1} parent=1 // pred_fallthru
      _
    // Predicated region
    $region22: #{tpu_custom_call.1} parent=1 // pred_check
      _
    $region23: #{tpu_custom_call.1} parent=1 // pred_check_branch
      %57 = sbr.rel (0) target = $region25
    $region24: #{tpu_custom_call.1} parent=1 // pred_region
      %59 = dma.done [#allocation3], 256
    $region25: #{tpu_custom_call.1} parent=1 // pred_fallthru
      _
    // Predicated region
    $region26: #{tpu_custom_call.1} parent=1 // pred_check
      _
    $region27: #{tpu_custom_call.1} parent=1 // pred_check_branch
      %61 = sbr.rel (0) target = $region29
    $region28: #{tpu_custom_call.1} parent=1 // pred_region
      %63 = dma.done [#allocation6], 2048
    $region29: #{tpu_custom_call.1} parent=1 // pred_fallthru
      _
    // Predicated region
    $region30: #{tpu_custom_call.1} parent=1 // pred_check
      _
    $region31: #{tpu_custom_call.1} parent=1 // pred_check_branch
      %65 = sbr.rel (0) target = $region33
    $region32: #{tpu_custom_call.1} parent=1 // pred_region
      %67 = dma.done [#allocation6], 2048
    $region33: #{tpu_custom_call.1} parent=1 // pred_fallthru
      _
    %v68 = vld [vmem:[#allocation2] sm:$0xff]
    %v69 = vld [vmem:[#allocation2 + $0x8] sm:$0xff]
    %v70 = vld [vmem:[#allocation5] sm:$0xff]
    %v71 = vld [vmem:[#allocation5 + $0x8] sm:$0xff]
    %v72 = vld [vmem:[#allocation5 + $0x10] sm:$0xff]
    %v73 = vld [vmem:[#allocation5 + $0x18] sm:$0xff]
    %v74 = vld [vmem:[#allocation5 + $0x20] sm:$0xff]
    %v75 = vld [vmem:[#allocation5 + $0x28] sm:$0xff]
    %v76 = vld [vmem:[#allocation5 + $0x30] sm:$0xff]
    %v77 = vld [vmem:[#allocation5 + $0x38] sm:$0xff]
    %v78 = vld [vmem:[#allocation5 + $0x40] sm:$0xff]
    %v79 = vld [vmem:[#allocation5 + $0x48] sm:$0xff]
    %v80 = vld [vmem:[#allocation5 + $0x50] sm:$0xff]
    %v81 = vld [vmem:[#allocation5 + $0x58] sm:$0xff]
    %v82 = vld [vmem:[#allocation5 + $0x60] sm:$0xff]
    %v83 = vld [vmem:[#allocation5 + $0x68] sm:$0xff]
    %v84 = vld [vmem:[#allocation5 + $0x70] sm:$0xff]
    %v85 = vld [vmem:[#allocation5 + $0x78] sm:$0xff]
    %v86 = vld [vmem:[%s2] sm:$0x1]
    %v88 = vperm.slane %v86, 0
    %90 = vmatpush.msra.mxu0 %v85
    %91 = vmatpush.msra.mxu0 %v84
    %92 = vmatpush.msra.mxu0 %v83
    %93 = vmatpush.msra.mxu0 %v82
    %94 = vmatpush.msra.mxu0 %v81
    %95 = vmatpush.msra.mxu0 %v80
    %96 = vmatpush.msra.mxu0 %v79
    %97 = vmatpush.msra.mxu0 %v78
    %98 = vmatpush.msra.mxu0 %v77
    %99 = vmatpush.msra.mxu0 %v76
    %100 = vmatpush.msra.mxu0 %v75
    %101 = vmatpush.msra.mxu0 %v74
    %102 = vmatpush.msra.mxu0 %v73
    %103 = vmatpush.msra.mxu0 %v72
    %104 = vmatpush.msra.mxu0 %v71
    %105 = vmatpush.msra.mxu0 %v70
    %106 = vmatmul.f32.gmra.mxu0 %v68
    %v107 = vpop.f32.mrf.mxu0
    %v108 = vadd.f32 %v88, %v107
    %109 = vmatmul.f32.gmra.mxu0 %v69
    %v110 = vpop.f32.mrf.mxu0
    %v111 = vadd.f32 %v88, %v110
    %112 = vdwg.mxu0
    %v113 = vmax.f32 %v108, 0.0
    %v114 = vmax.f32 %v111, 0.0
    %v115 = vld [vmem:[#allocation7] sm:$0xff]
    %v116 = vld [vmem:[#allocation7 + $0x8] sm:$0xff]
    %v117 = vld [vmem:[#allocation7 + $0x10] sm:$0xff]
    %v118 = vld [vmem:[#allocation7 + $0x18] sm:$0xff]
    %v119 = vld [vmem:[#allocation7 + $0x20] sm:$0xff]
    %v120 = vld [vmem:[#allocation7 + $0x28] sm:$0xff]
    %v121 = vld [vmem:[#allocation7 + $0x30] sm:$0xff]
    %v122 = vld [vmem:[#allocation7 + $0x38] sm:$0xff]
    %v123 = vld [vmem:[#allocation7 + $0x40] sm:$0xff]
    %v124 = vld [vmem:[#allocation7 + $0x48] sm:$0xff]
    %v125 = vld [vmem:[#allocation7 + $0x50] sm:$0xff]
    %v126 = vld [vmem:[#allocation7 + $0x58] sm:$0xff]
    %v127 = vld [vmem:[#allocation7 + $0x60] sm:$0xff]
    %v128 = vld [vmem:[#allocation7 + $0x68] sm:$0xff]
    %v129 = vld [vmem:[#allocation7 + $0x70] sm:$0xff]
    %v130 = vld [vmem:[#allocation7 + $0x78] sm:$0xff]
    %v131 = vld [vmem:[%s4] sm:$0x1]
    %v133 = vperm.slane %v131, 0
    %135 = vmatpush.msra.mxu0 %v130
    %136 = vmatpush.msra.mxu0 %v129
    %137 = vmatpush.msra.mxu0 %v128
    %138 = vmatpush.msra.mxu0 %v127
    %139 = vmatpush.msra.mxu0 %v126
    %140 = vmatpush.msra.mxu0 %v125
    %141 = vmatpush.msra.mxu0 %v124
    %142 = vmatpush.msra.mxu0 %v123
    %143 = vmatpush.msra.mxu0 %v122
    %144 = vmatpush.msra.mxu0 %v121
    %145 = vmatpush.msra.mxu0 %v120
    %146 = vmatpush.msra.mxu0 %v119
    %147 = vmatpush.msra.mxu0 %v118
    %148 = vmatpush.msra.mxu0 %v117
    %149 = vmatpush.msra.mxu0 %v116
    %150 = vmatpush.msra.mxu0 %v115
    %151 = vmatmul.f32.gmra.mxu0 %v113
    %v152 = vpop.f32.mrf.mxu0
    %v153 = vadd.f32 %v133, %v152
    %154 = vmatmul.f32.gmra.mxu0 %v114
    %v155 = vpop.f32.mrf.mxu0
    %v156 = vadd.f32 %v133, %v155
    %157 = vdwg.mxu0
    %158 = vst [vmem:[#allocation8] sm:$0xff] %v153
    %159 = vst [vmem:[#allocation8 + $0x8] sm:$0xff] %v156
    // Predicated region
    $region34: #{tpu_custom_call.1} parent=1 // pred_check
      _
    $region35: #{tpu_custom_call.1} parent=1 // pred_check_branch
      %161 = sbr.rel (0) target = $region37
    $region36: #{tpu_custom_call.1} parent=1 // pred_region
      %163 = vsyncadd [#allocation4], 0
      %s164 = sshll.u32 [#allocation8], 4
      %s165 = int_to_ptr.vmem [resolvable:$true] %s164
      %s166 = sshll.u32 %s5, 4
      %s167 = int_to_ptr.hbm [resolvable:$true] %s166
      %172 = dma.vmem_to_hbm [thread:$0]  %s165, 256, %s167, [#allocation4], 128, 128, 8
    $region37: #{tpu_custom_call.1} parent=1 // pred_fallthru
      _
    // Predicated region
    $region38: #{tpu_custom_call.1} parent=1 // pred_check
      _
    $region39: #{tpu_custom_call.1} parent=1 // pred_check_branch
      %174 = sbr.rel (0) target = $region41
    $region40: #{tpu_custom_call.1} parent=1 // pred_region
      %176 = dma.done [#allocation4], 256
    $region41: #{tpu_custom_call.1} parent=1 // pred_fallthru
      _
    %177 = vsyncpa [#allocation3], 1
    %178 = vsyncpa [#allocation6], 1
    %179 = vsyncpa [#allocation4], 1

</llo_original>
